<compile_context>
chip_gen: v5e
topology: v5e:2x2
jax: 0.10.0
libtpu: 0.0.40
codegen_flags: <defaults>
</compile_context>

<pallas_src>
import functools

import numpy as np
import jax
import jax.numpy as jnp
from jax import lax
from jax.experimental import pallas as pl
from jax.experimental.pallas import tpu as pltpu


def _sum_all(x):
    """(A, B) -> (1, 1) total, via explicit lane then sublane reduction."""
    return jnp.sum(jnp.sum(x, axis=1, keepdims=True), axis=0, keepdims=True)


# ----------------------------------------------------------------------------
# Pallas kernel: per-sample discriminative loss (two passes over location tiles)
# ----------------------------------------------------------------------------
def _make_kernel(n_objects, delta_v, delta_d):
    n_objects = int(n_objects)
    delta_v = float(delta_v)
    delta_d = float(delta_d)

    def kernel(pred_ref, gt_ref, loss_ref, sums_ref, counts_ref, means_ref, var_ref):
        p = pl.program_id(0)      # 0: means pass, 1: variance pass
        t = pl.program_id(1)      # location-tile index
        nt = pl.num_programs(1)

        pred = pred_ref[...]                               # (F, TL) f32, lane-dense
        gt = gt_ref[...].astype(jnp.float32)               # (K, TL) f32, already sliced to K

        # ---- pass 0: masked sums & pixel counts (single MXU contraction) -----
        @pl.when(jnp.logical_and(p == 0, t == 0))
        def _():
            sums_ref[...] = jnp.zeros_like(sums_ref)
            counts_ref[...] = jnp.zeros_like(counts_ref)

        @pl.when(p == 0)
        def _():
            # sums[k, f] += sum_l gt[k, l] * pred[f, l]   -- one matmul over locations
            sums_ref[...] += lax.dot_general(
                gt, pred, (((1,), (1,)), ((), ())),
                preferred_element_type=jnp.float32)               # (K, F)
            counts_ref[...] += jnp.sum(gt, axis=1, keepdims=True)  # (K, 1)

        @pl.when(jnp.logical_and(p == 0, t == nt - 1))
        def _():
            means_ref[...] = sums_ref[...] / counts_ref[...]       # (K, F)
            var_ref[...] = jnp.zeros_like(var_ref)

        # ---- pass 1: variance term via squared-distance identity -------------
        @pl.when(p == 1)
        def _():
            means = means_ref[...]                                 # (K, F)
            mp = jnp.dot(means, pred,
                         preferred_element_type=jnp.float32)       # (K, TL) on MXU
            p2 = jnp.sum(pred * pred, axis=0, keepdims=True)       # (1, TL)
            m2 = jnp.sum(means * means, axis=1, keepdims=True)     # (K, 1)
            d2 = jnp.maximum(p2 - 2.0 * mp + m2, 0.0)              # (K, TL)
            dist = jnp.sqrt(d2)
            hinge = jnp.maximum(dist - delta_v, 0.0)
            var_ref[...] += _sum_all(hinge * hinge * gt)           # (1, 1)

        # ---- finalize: inter-cluster (Gram) + regularization terms -----------
        @pl.when(jnp.logical_and(p == 1, t == nt - 1))
        def _():
            means = means_ref[...]                                 # (K, F)
            gt_total = _sum_all(counts_ref[...])                   # (1, 1)
            var_term = var_ref[...] / gt_total

            # Pairwise distances through one small Gram matrix on the MXU.
            G = lax.dot_general(means, means, (((1,), (1,)), ((), ())),
                                preferred_element_type=jnp.float32)     # (K, K)
            m2_col = jnp.sum(means * means, axis=1, keepdims=True)      # (K, 1)
            row = lax.broadcasted_iota(jnp.int32, (n_objects, n_objects), 0)
            col = lax.broadcasted_iota(jnp.int32, (n_objects, n_objects), 1)
            eye_f = (row == col).astype(jnp.float32)
            off = 1.0 - eye_f
            m2_row = jnp.sum(G * eye_f, axis=0, keepdims=True)          # (1, K)
            dm = jnp.sqrt(jnp.maximum(m2_col + m2_row - 2.0 * G, 0.0))  # (K, K)
            margin = (2.0 * delta_d) * off
            h = jnp.maximum(margin - dm, 0.0) * off
            dist_sum = _sum_all(h * h)
            denom = float(n_objects * (n_objects - 1))
            # matches the reference: n_objects == 1 gives 0/0 -> nan
            dist_term = dist_sum / denom if denom != 0.0 else dist_sum / 0.0

            reg_term = _sum_all(jnp.sqrt(m2_col)) / float(n_objects)

            alpha, beta, gamma = 1.0, 1.0, 0.001
            loss_ref[...] = alpha * var_term + beta * dist_term + gamma * reg_term

    return kernel


# ----------------------------------------------------------------------------
# Generation-aware VMEM budget + tile selection
# ----------------------------------------------------------------------------
def _vmem_limit_bytes():
    """Pick a scoped-VMEM limit per TPU generation (falls back to the v7x-safe cap)."""
    try:
        cap = int(pltpu.get_tpu_info().vmem_capacity_bytes)
    except Exception:
        cap = 64 * 1024 * 1024
    if cap >= 96 * 1024 * 1024:
        return 100 * 1024 * 1024        # v5e / v6e: 128 MiB physical VMEM
    return 52 * 1024 * 1024             # v7x: 64 MiB physical VMEM


def _choose_tile(L, n_filters, n_objects, budget_bytes):
    """Largest location tile (multiple of 128) that fits the VMEM budget.

    Per-location accounting includes: double-buffered f32 pred, double-buffered int8 gt
    (padded to 32 sublanes), the in-kernel f32 cast of gt, the (K,TL) pass-1 MXU output,
    the (1,TL) ||p||^2 row, several fused/materialized elementwise temporaries, and
    headroom for a possible materialized transpose in the pass-0 contraction."""
    f_pad = -(-int(n_filters) // 8) * 8
    k_pad = -(-int(n_objects) // 8) * 8
    per_loc = 2 * (f_pad * 4) + 2 * 32 + 7 * (k_pad * 4) + 32
    cap = max(128, (int(budget_bytes) // per_loc) // 128 * 128)
    l_128 = -(-int(L) // 128) * 128
    if l_128 <= cap:
        return int(l_128), 1
    tl = int(cap)
    nt = int(-(-l_128 // tl))
    return tl, nt


# ----------------------------------------------------------------------------
# Cached builder: one compiled kernel per static configuration
# ----------------------------------------------------------------------------
@functools.lru_cache(maxsize=None)
def _make_sample_loss_fn(n_objects, n_filters, n_instances, H, W, delta_v, delta_d):
    del n_instances  # only the active n_objects mask rows are ever streamed
    L = H * W
    vmem_limit = _vmem_limit_bytes()
    tl, nt = _choose_tile(L, n_filters, n_objects, vmem_limit - 4 * 1024 * 1024)
    l_pad = tl * nt

    kernel = _make_kernel(n_objects, delta_v, delta_d)
    call = pl.pallas_call(
        kernel,
        out_shape=jax.ShapeDtypeStruct((1, 1), jnp.float32),
        grid_spec=pltpu.PrefetchScalarGridSpec(
            num_scalar_prefetch=0,
            grid=(2, nt),
            in_specs=[
                pl.BlockSpec((n_filters, tl), lambda p, t: (0, t)),
                pl.BlockSpec((n_objects, tl), lambda p, t: (0, t)),
            ],
            out_specs=pl.BlockSpec((1, 1), lambda p, t: (0, 0)),
            scratch_shapes=[
                pltpu.VMEM((n_objects, n_filters), jnp.float32),   # masked sums
                pltpu.VMEM((n_objects, 1), jnp.float32),           # pixel counts
                pltpu.VMEM((n_objects, n_filters), jnp.float32),   # cluster means
                pltpu.VMEM((1, 1), jnp.float32),                   # variance accumulator
            ],
        ),
        compiler_params=pltpu.CompilerParams(
            # Both axes carry sequential scratch accumulation -> keep "arbitrary".
            dimension_semantics=("arbitrary", "arbitrary"),
            vmem_limit_bytes=vmem_limit,
        ),
    )

    def fn(sample_input, sample_target):
        # Lane-dense layout: (C,H,W) -> (C, H*W) and (K,H,W) -> (K, H*W) are free reshapes.
        # TODO(synk): bf16 streaming of pred would cut HBM bytes further, but it drifts
        # past the rtol=1e-4 check with the squared-distance identity, so pred stays f32.
        pred = sample_input.reshape(n_filters, L).astype(jnp.float32)
        gt = sample_target[:n_objects].reshape(n_objects, L).astype(jnp.int8)
        if l_pad != L:
            # Zero padding is inert: padded locations have gt=0, contributing nothing
            # to sums, counts or the hinge term.
            pred = jnp.pad(pred, ((0, 0), (0, l_pad - L)))
            gt = jnp.pad(gt, ((0, 0), (0, l_pad - L)))
        return call(pred, gt)[0, 0]

    return jax.jit(fn)


def discriminative_loss_sample(sample_input, sample_target, n_objects, max_n_objects,
                               delta_v, delta_d, norm=2):
    """sample_input: (n_filters, H, W) f32; sample_target: (n_instances, H, W) int."""
    assert norm == 2  # TODO(synk): only the L2-norm path of the reference is implemented.
    del max_n_objects  # zero-padding of means in the reference has no effect downstream
    n_filters, H, W = sample_input.shape
    n_instances = sample_target.shape[0]
    fn = _make_sample_loss_fn(int(n_objects), int(n_filters), int(n_instances),
                              int(H), int(W), float(delta_v), float(delta_d))
    return fn(sample_input, sample_target)


class DiscriminativeLoss:
    """JAX/Pallas port of the reference DiscriminativeLoss.forward."""

    def __init__(self, delta_var, delta_dist, norm, size_average=True, reduce=True,
                 cuda=False, device=None):
        self.reduce = reduce
        self.size_average = size_average
        self.delta_var = float(delta_var)
        self.delta_dist = float(delta_dist)
        self.norm = norm

    def __call__(self, input, target, n_objects, max_n_objects):
        # n_objects is host-side data (the reference calls .detach().numpy()).
        n_objects = np.asarray(n_objects)
        total_loss = 0
        sample_loss = 0
        bs = len(n_objects)
        if bs > 0:
            # NOTE: the reference accumulates sample_loss OUTSIDE the batch loop, so
            # only the LAST sample contributes. We therefore launch only that sample's
            # kernel (identical forward value, N-1 fewer dead launches).
            idx = bs - 1
            k = int(n_objects[idx, 0])
            if k > 0:
                sample_loss = discriminative_loss_sample(
                    input[idx], target[idx], k, max_n_objects,
                    self.delta_var, self.delta_dist, self.norm)
            else:
                sample_loss = 0
        total_loss = total_loss + sample_loss
        return total_loss


# ----------------------------------------------------------------------------
# Pure-numpy reference of the same forward pass (for verification only)
# ----------------------------------------------------------------------------
def _discriminative_loss_ref(inp, tgt, n_objects, delta_v, delta_d):
    n_filters, H, W = inp.shape
    n_instances = tgt.shape[0]
    pred = np.transpose(inp, (1, 2, 0)).reshape(H * W, n_filters).astype(np.float32)
    gt = np.transpose(tgt, (1, 2, 0)).reshape(H * W, n_instances).astype(np.float32)
    gt_s = gt[:, :n_objects]
    counts = gt_s.sum(0)
    means = (pred[:, None, :] * gt_s[:, :, None]).sum(0) / counts[:, None]
    dist = np.linalg.norm(pred[:, None, :] - means[None, :, :], axis=2)
    var = np.maximum(dist - delta_v, 0.0) ** 2 * gt_s
    var_term = var.sum() / gt_s.sum()
    dm = np.linalg.norm(means[:, None, :] - means[None, :, :], axis=2)
    margin = 2.0 * delta_d * (1.0 - np.eye(n_objects))
    dist_term = (np.maximum(margin - dm, 0.0) ** 2).sum() / (n_objects * (n_objects - 1))
    reg_term = np.linalg.norm(means, axis=1).mean()
    return 1.0 * var_term + 1.0 * dist_term + 0.001 * reg_term


def _reference_forward(x, target, n_objects, delta_v, delta_d):
    sample_loss = 0.0
    for idx in range(len(n_objects)):
        k = int(n_objects[idx, 0])
        if k > 0:
            sample_loss = _discriminative_loss_ref(x[idx], target[idx], k, delta_v, delta_d)
        else:
            sample_loss = 0.0
    return 0.0 + sample_loss  # same "last sample only" behavior as the module


if __name__ == "__main__":
    key = jax.random.PRNGKey(0)
    bs, n_filters, H, W = 2, 8, 16, 16
    max_n_objects = 4
    n_instances = max_n_objects

    k1, k2, k3, k4 = jax.random.split(key, 4)
    x = jax.random.normal(k1, (bs, n_filters, H, W), dtype=jnp.float32)
    labels = jax.random.randint(k2, (bs, H, W), 0, n_instances)
    # one-hot instance masks: (bs, n_instances, H, W), integer (reference uses int64)
    target = (labels[:, None, :, :] ==
              jnp.arange(n_instances)[None, :, None, None]).astype(jnp.int32)
    n_objects = np.array([[3], [2]], dtype=np.int32)

    # Per-sample checks (exercises both k values).
    for idx in range(bs):
        k = int(n_objects[idx, 0])
        got = discriminative_loss_sample(x[idx], target[idx], k, max_n_objects, 0.5, 1.5)
        got = jax.block_until_ready(got)
        ref = _discriminative_loss_ref(np.asarray(x[idx]), np.asarray(target[idx]), k, 0.5, 1.5)
        np.testing.assert_allclose(np.asarray(got), np.float32(ref), rtol=1e-4, atol=1e-5)

    # Non-128-multiple spatial size -> exercises the location-padding path.
    xs = jax.random.normal(k3, (6, 12, 12), dtype=jnp.float32)
    labels_s = jax.random.randint(k4, (12, 12), 0, 5)
    target_s = (labels_s[None, :, :] == jnp.arange(5)[:, None, None]).astype(jnp.int32)
    got_s = jax.block_until_ready(
        discriminative_loss_sample(xs, target_s, 4, 5, 0.5, 1.5))
    ref_s = _discriminative_loss_ref(np.asarray(xs), np.asarray(target_s), 4, 0.5, 1.5)
    np.testing.assert_allclose(np.asarray(got_s), np.float32(ref_s), rtol=1e-4, atol=1e-5)

    # Module-level check (reference semantics: only the last sample contributes).
    loss_fn = DiscriminativeLoss(delta_var=0.5, delta_dist=1.5, norm=2)
    loss = loss_fn(x, target, n_objects, max_n_objects)
    loss = jax.block_until_ready(loss)
    ref = _reference_forward(np.asarray(x), np.asarray(target), n_objects, 0.5, 1.5)
    np.testing.assert_allclose(np.asarray(loss), np.float32(ref), rtol=1e-4, atol=1e-5)

    print("KERNEL_OK")
</pallas_src>

<mosaic_0001>
module attributes {stable_mosaic.version = 11 : i64} {
  func.func @kernel(%arg0: i32, %arg1: i32, %arg2: memref<8x256xf32, #tpu.memory_space<vmem>>, %arg3: memref<3x256xi8, #tpu.memory_space<vmem>>, %arg4: memref<1x1xf32, #tpu.memory_space<vmem>>, %arg5: memref<3x8xf32, #tpu.memory_space<vmem>>, %arg6: memref<3x1xf32, #tpu.memory_space<vmem>>, %arg7: memref<3x8xf32, #tpu.memory_space<vmem>>, %arg8: memref<1x1xf32, #tpu.memory_space<vmem>>) attributes {dimension_semantics = [#tpu.dimension_semantics<arbitrary>, #tpu.dimension_semantics<arbitrary>], iteration_bounds = array<i64: 2, 1>, scalar_prefetch = 0 : i64, scratch_operands = 4 : i64, tpu.core_type = #tpu.core_type<tc>, window_params = [{transform_indices = @transform_0, window_bounds = array<i64: 8, 256>}, {transform_indices = @transform_1, window_bounds = array<i64: 3, 256>}, {pipeline_mode = #tpu.pipeline_mode<synchronous>, transform_indices = @transform_2, window_bounds = array<i64: 1, 1>}]} {
    %c0 = arith.constant 0 : index
    %c0_0 = arith.constant 0 : index
    %0 = vector.load %arg2[%c0, %c0_0] : memref<8x256xf32, #tpu.memory_space<vmem>>, vector<8x256xf32>
    %c0_1 = arith.constant 0 : index
    %c0_2 = arith.constant 0 : index
    %1 = vector.load %arg3[%c0_1, %c0_2] : memref<3x256xi8, #tpu.memory_space<vmem>>, vector<3x256xi8>
    %2 = arith.sitofp %1 : vector<3x256xi8> to vector<3x256xf32>
    %c0_i32 = arith.constant 0 : i32
    %3 = arith.cmpi eq, %arg0, %c0_i32 : i32
    %c0_i32_3 = arith.constant 0 : i32
    %4 = arith.cmpi eq, %arg1, %c0_i32_3 : i32
    %5 = arith.andi %3, %4 : i1
    %6 = arith.extui %5 : i1 to i32
    %c0_i32_4 = arith.constant 0 : i32
    %7 = arith.cmpi ne, %6, %c0_i32_4 : i32
    scf.if %7 {
      %cst = arith.constant 0.000000e+00 : f32
      %24 = vector.broadcast %cst : f32 to vector<3x8xf32>
      %c0_14 = arith.constant 0 : index
      %c0_15 = arith.constant 0 : index
      %25 = vector.load %arg5[%c0_14, %c0_15] : memref<3x8xf32, #tpu.memory_space<vmem>>, vector<3x8xf32>
      tpu.vector_store %arg5[%c0_14, %c0_15], %24 {strides = array<i32>} : memref<3x8xf32, #tpu.memory_space<vmem>>, vector<3x8xf32>,
      %cst_16 = arith.constant 0.000000e+00 : f32
      %26 = vector.broadcast %cst_16 : f32 to vector<3x1xf32>
      %c0_17 = arith.constant 0 : index
      %c0_18 = arith.constant 0 : index
      %27 = vector.load %arg6[%c0_17, %c0_18] : memref<3x1xf32, #tpu.memory_space<vmem>>, vector<3x1xf32>
      tpu.vector_store %arg6[%c0_17, %c0_18], %26 {strides = array<i32>} : memref<3x1xf32, #tpu.memory_space<vmem>>, vector<3x1xf32>,
    } else {
    }
    %c0_i32_5 = arith.constant 0 : i32
    %8 = arith.cmpi eq, %arg0, %c0_i32_5 : i32
    %9 = arith.extui %8 : i1 to i32
    %c0_i32_6 = arith.constant 0 : i32
    %10 = arith.cmpi ne, %9, %c0_i32_6 : i32
    scf.if %10 {
      %c0_14 = arith.constant 0 : index
      %c0_15 = arith.constant 0 : index
      %24 = vector.load %arg5[%c0_14, %c0_15] : memref<3x8xf32, #tpu.memory_space<vmem>>, vector<3x8xf32>
      %cst = arith.constant dense<0.000000e+00> : vector<3x8xf32>
      %25 = tpu.matmul %2, %0, %cst {dimension_numbers = #tpu.dot_dimension_numbers<[1], [1], [0], [0], [0, 0, 1, 0], [], []>} : vector<3x256xf32>, vector<8x256xf32>, vector<3x8xf32> -> vector<3x8xf32>
      %26 = arith.addf %24, %25 : vector<3x8xf32>
      %c0_16 = arith.constant 0 : index
      %c0_17 = arith.constant 0 : index
      %27 = vector.load %arg5[%c0_16, %c0_17] : memref<3x8xf32, #tpu.memory_space<vmem>>, vector<3x8xf32>
      tpu.vector_store %arg5[%c0_16, %c0_17], %26 {strides = array<i32>} : memref<3x8xf32, #tpu.memory_space<vmem>>, vector<3x8xf32>,
      %c0_18 = arith.constant 0 : index
      %c0_19 = arith.constant 0 : index
      %28 = vector.load %arg6[%c0_18, %c0_19] : memref<3x1xf32, #tpu.memory_space<vmem>>, vector<3x1xf32>
      %cst_20 = arith.constant dense<0.000000e+00> : vector<3xf32>
      %29 = vector.multi_reduction <add>, %2, %cst_20 [1] : vector<3x256xf32> to vector<3xf32>
      %30 = vector.shape_cast %29 : vector<3xf32> to vector<3x1xf32>
      %31 = arith.addf %28, %30 : vector<3x1xf32>
      %c0_21 = arith.constant 0 : index
      %c0_22 = arith.constant 0 : index
      %32 = vector.load %arg6[%c0_21, %c0_22] : memref<3x1xf32, #tpu.memory_space<vmem>>, vector<3x1xf32>
      tpu.vector_store %arg6[%c0_21, %c0_22], %31 {strides = array<i32>} : memref<3x1xf32, #tpu.memory_space<vmem>>, vector<3x1xf32>,
    } else {
    }
    %c0_i32_7 = arith.constant 0 : i32
    %11 = arith.cmpi eq, %arg0, %c0_i32_7 : i32
    %c0_i32_8 = arith.constant 0 : i32
    %12 = arith.cmpi eq, %arg1, %c0_i32_8 : i32
    %13 = arith.andi %11, %12 : i1
    %14 = arith.extui %13 : i1 to i32
    %c0_i32_9 = arith.constant 0 : i32
    %15 = arith.cmpi ne, %14, %c0_i32_9 : i32
    scf.if %15 {
      %c0_14 = arith.constant 0 : index
      %c0_15 = arith.constant 0 : index
      %24 = vector.load %arg5[%c0_14, %c0_15] : memref<3x8xf32, #tpu.memory_space<vmem>>, vector<3x8xf32>
      %c0_16 = arith.constant 0 : index
      %c0_17 = arith.constant 0 : index
      %25 = vector.load %arg6[%c0_16, %c0_17] : memref<3x1xf32, #tpu.memory_space<vmem>>, vector<3x1xf32>
      %26 = vector.broadcast %25 : vector<3x1xf32> to vector<3x8xf32>
      %27 = arith.divf %24, %26 : vector<3x8xf32>
      %c0_18 = arith.constant 0 : index
      %c0_19 = arith.constant 0 : index
      %28 = vector.load %arg7[%c0_18, %c0_19] : memref<3x8xf32, #tpu.memory_space<vmem>>, vector<3x8xf32>
      tpu.vector_store %arg7[%c0_18, %c0_19], %27 {strides = array<i32>} : memref<3x8xf32, #tpu.memory_space<vmem>>, vector<3x8xf32>,
      %cst = arith.constant 0.000000e+00 : f32
      %29 = vector.broadcast %cst : f32 to vector<1x1xf32>
      %c0_20 = arith.constant 0 : index
      %c0_21 = arith.constant 0 : index
      %30 = vector.load %arg8[%c0_20, %c0_21] : memref<1x1xf32, #tpu.memory_space<vmem>>, vector<1x1xf32>
      tpu.vector_store %arg8[%c0_20, %c0_21], %29 {strides = array<i32>} : memref<1x1xf32, #tpu.memory_space<vmem>>, vector<1x1xf32>,
    } else {
    }
    %c1_i32 = arith.constant 1 : i32
    %16 = arith.cmpi eq, %arg0, %c1_i32 : i32
    %17 = arith.extui %16 : i1 to i32
    %c0_i32_10 = arith.constant 0 : i32
    %18 = arith.cmpi ne, %17, %c0_i32_10 : i32
    scf.if %18 {
      %c0_14 = arith.constant 0 : index
      %c0_15 = arith.constant 0 : index
      %24 = vector.load %arg7[%c0_14, %c0_15] : memref<3x8xf32, #tpu.memory_space<vmem>>, vector<3x8xf32>
      %cst = arith.constant dense<0.000000e+00> : vector<3x256xf32>
      %25 = tpu.matmul %24, %0, %cst {dimension_numbers = #tpu.dot_dimension_numbers<[1], [0], [0], [1], [0, 0, 1, 1], [], []>} : vector<3x8xf32>, vector<8x256xf32>, vector<3x256xf32> -> vector<3x256xf32>
      %26 = arith.mulf %0, %0 : vector<8x256xf32>
      %cst_16 = arith.constant dense<0.000000e+00> : vector<256xf32>
      %27 = vector.multi_reduction <add>, %26, %cst_16 [0] : vector<8x256xf32> to vector<256xf32>
      %28 = vector.shape_cast %27 : vector<256xf32> to vector<1x256xf32>
      %29 = arith.mulf %24, %24 : vector<3x8xf32>
      %cst_17 = arith.constant dense<0.000000e+00> : vector<3xf32>
      %30 = vector.multi_reduction <add>, %29, %cst_17 [1] : vector<3x8xf32> to vector<3xf32>
      %31 = vector.shape_cast %30 : vector<3xf32> to vector<3x1xf32>
      %cst_18 = arith.constant 2.000000e+00 : f32
      %32 = vector.broadcast %cst_18 : f32 to vector<3x256xf32>
      %33 = arith.mulf %32, %25 : vector<3x256xf32>
      %34 = vector.broadcast %28 : vector<1x256xf32> to vector<3x256xf32>
      %35 = arith.subf %34, %33 : vector<3x256xf32>
      %36 = vector.broadcast %31 : vector<3x1xf32> to vector<3x256xf32>
      %37 = arith.addf %35, %36 : vector<3x256xf32>
      %cst_19 = arith.constant 0.000000e+00 : f32
      %38 = vector.broadcast %cst_19 : f32 to vector<3x256xf32>
      %39 = arith.maximumf %37, %38 : vector<3x256xf32>
      %40 = math.sqrt %39 : vector<3x256xf32>
      %cst_20 = arith.constant 5.000000e-01 : f32
      %41 = vector.broadcast %cst_20 : f32 to vector<3x256xf32>
      %42 = arith.subf %40, %41 : vector<3x256xf32>
      %cst_21 = arith.constant 0.000000e+00 : f32
      %43 = vector.broadcast %cst_21 : f32 to vector<3x256xf32>
      %44 = arith.maximumf %42, %43 : vector<3x256xf32>
      %c0_22 = arith.constant 0 : index
      %c0_23 = arith.constant 0 : index
      %45 = vector.load %arg8[%c0_22, %c0_23] : memref<1x1xf32, #tpu.memory_space<vmem>>, vector<1x1xf32>
      %46 = arith.mulf %44, %44 : vector<3x256xf32>
      %47 = arith.mulf %46, %2 : vector<3x256xf32>
      %cst_24 = arith.constant dense<0.000000e+00> : vector<3xf32>
      %48 = vector.multi_reduction <add>, %47, %cst_24 [1] : vector<3x256xf32> to vector<3xf32>
      %49 = vector.shape_cast %48 : vector<3xf32> to vector<3x1xf32>
      %cst_25 = arith.constant dense<0.000000e+00> : vector<1xf32>
      %50 = vector.multi_reduction <add>, %49, %cst_25 [0] : vector<3x1xf32> to vector<1xf32>
      %51 = vector.shape_cast %50 : vector<1xf32> to vector<1x1xf32>
      %52 = arith.addf %45, %51 : vector<1x1xf32>
      %c0_26 = arith.constant 0 : index
      %c0_27 = arith.constant 0 : index
      %53 = vector.load %arg8[%c0_26, %c0_27] : memref<1x1xf32, #tpu.memory_space<vmem>>, vector<1x1xf32>
      tpu.vector_store %arg8[%c0_26, %c0_27], %52 {strides = array<i32>} : memref<1x1xf32, #tpu.memory_space<vmem>>, vector<1x1xf32>,
    } else {
    }
    %c1_i32_11 = arith.constant 1 : i32
    %19 = arith.cmpi eq, %arg0, %c1_i32_11 : i32
    %c0_i32_12 = arith.constant 0 : i32
    %20 = arith.cmpi eq, %arg1, %c0_i32_12 : i32
    %21 = arith.andi %19, %20 : i1
    %22 = arith.extui %21 : i1 to i32
    %c0_i32_13 = arith.constant 0 : i32
    %23 = arith.cmpi ne, %22, %c0_i32_13 : i32
    scf.if %23 {
      %c0_14 = arith.constant 0 : index
      %c0_15 = arith.constant 0 : index
      %24 = vector.load %arg7[%c0_14, %c0_15] : memref<3x8xf32, #tpu.memory_space<vmem>>, vector<3x8xf32>
      %c0_16 = arith.constant 0 : index
      %c0_17 = arith.constant 0 : index
      %25 = vector.load %arg6[%c0_16, %c0_17] : memref<3x1xf32, #tpu.memory_space<vmem>>, vector<3x1xf32>
      %cst = arith.constant dense<0.000000e+00> : vector<3xf32>
      %26 = vector.multi_reduction <add>, %25, %cst [1] : vector<3x1xf32> to vector<3xf32>
      %27 = vector.shape_cast %26 : vector<3xf32> to vector<3x1xf32>
      %cst_18 = arith.constant dense<0.000000e+00> : vector<1xf32>
      %28 = vector.multi_reduction <add>, %27, %cst_18 [0] : vector<3x1xf32> to vector<1xf32>
      %29 = vector.shape_cast %28 : vector<1xf32> to vector<1x1xf32>
      %c0_19 = arith.constant 0 : index
      %c0_20 = arith.constant 0 : index
      %30 = vector.load %arg8[%c0_19, %c0_20] : memref<1x1xf32, #tpu.memory_space<vmem>>, vector<1x1xf32>
      %31 = arith.divf %30, %29 : vector<1x1xf32>
      %cst_21 = arith.constant dense<0.000000e+00> : vector<3x3xf32>
      %32 = tpu.matmul %24, %24, %cst_21 {dimension_numbers = #tpu.dot_dimension_numbers<[1], [1], [0], [0], [0, 0, 1, 0], [], []>} : vector<3x8xf32>, vector<3x8xf32>, vector<3x3xf32> -> vector<3x3xf32>
      %33 = arith.mulf %24, %24 : vector<3x8xf32>
      %cst_22 = arith.constant dense<0.000000e+00> : vector<3xf32>
      %34 = vector.multi_reduction <add>, %33, %cst_22 [1] : vector<3x8xf32> to vector<3xf32>
      %35 = vector.shape_cast %34 : vector<3xf32> to vector<3x1xf32>
      %36 = tpu.iota {dimensions = array<i32: 0>} : vector<3x3xi32>
      %37 = tpu.iota {dimensions = array<i32: 1>} : vector<3x3xi32>
      %38 = arith.cmpi eq, %36, %37 : vector<3x3xi32>
      %39 = arith.extui %38 : vector<3x3xi1> to vector<3x3xi32>
      %40 = arith.sitofp %39 : vector<3x3xi32> to vector<3x3xf32>
      %cst_23 = arith.constant 1.000000e+00 : f32
      %41 = vector.broadcast %cst_23 : f32 to vector<3x3xf32>
      %42 = arith.subf %41, %40 : vector<3x3xf32>
      %43 = arith.mulf %32, %40 : vector<3x3xf32>
      %cst_24 = arith.constant dense<0.000000e+00> : vector<3xf32>
      %44 = vector.multi_reduction <add>, %43, %cst_24 [0] : vector<3x3xf32> to vector<3xf32>
      %45 = vector.shape_cast %44 : vector<3xf32> to vector<1x3xf32>
      %46 = vector.broadcast %35 : vector<3x1xf32> to vector<3x3xf32>
      %47 = vector.broadcast %45 : vector<1x3xf32> to vector<3x3xf32>
      %48 = arith.addf %46, %47 : vector<3x3xf32>
      %cst_25 = arith.constant 2.000000e+00 : f32
      %49 = vector.broadcast %cst_25 : f32 to vector<3x3xf32>
      %50 = arith.mulf %49, %32 : vector<3x3xf32>
      %51 = arith.subf %48, %50 : vector<3x3xf32>
      %cst_26 = arith.constant 0.000000e+00 : f32
      %52 = vector.broadcast %cst_26 : f32 to vector<3x3xf32>
      %53 = arith.maximumf %51, %52 : vector<3x3xf32>
      %54 = math.sqrt %53 : vector<3x3xf32>
      %cst_27 = arith.constant 3.000000e+00 : f32
      %55 = vector.broadcast %cst_27 : f32 to vector<3x3xf32>
      %56 = arith.mulf %55, %42 : vector<3x3xf32>
      %57 = arith.subf %56, %54 : vector<3x3xf32>
      %cst_28 = arith.constant 0.000000e+00 : f32
      %58 = vector.broadcast %cst_28 : f32 to vector<3x3xf32>
      %59 = arith.maximumf %57, %58 : vector<3x3xf32>
      %60 = arith.mulf %59, %42 : vector<3x3xf32>
      %61 = arith.mulf %60, %60 : vector<3x3xf32>
      %cst_29 = arith.constant dense<0.000000e+00> : vector<3xf32>
      %62 = vector.multi_reduction <add>, %61, %cst_29 [1] : vector<3x3xf32> to vector<3xf32>
      %63 = vector.shape_cast %62 : vector<3xf32> to vector<3x1xf32>
      %cst_30 = arith.constant dense<0.000000e+00> : vector<1xf32>
      %64 = vector.multi_reduction <add>, %63, %cst_30 [0] : vector<3x1xf32> to vector<1xf32>
      %65 = vector.shape_cast %64 : vector<1xf32> to vector<1x1xf32>
      %cst_31 = arith.constant 6.000000e+00 : f32
      %66 = vector.broadcast %cst_31 : f32 to vector<1x1xf32>
      %67 = arith.divf %65, %66 : vector<1x1xf32>
      %68 = math.sqrt %35 : vector<3x1xf32>
      %cst_32 = arith.constant dense<0.000000e+00> : vector<3xf32>
      %69 = vector.multi_reduction <add>, %68, %cst_32 [1] : vector<3x1xf32> to vector<3xf32>
      %70 = vector.shape_cast %69 : vector<3xf32> to vector<3x1xf32>
      %cst_33 = arith.constant dense<0.000000e+00> : vector<1xf32>
      %71 = vector.multi_reduction <add>, %70, %cst_33 [0] : vector<3x1xf32> to vector<1xf32>
      %72 = vector.shape_cast %71 : vector<1xf32> to vector<1x1xf32>
      %cst_34 = arith.constant 3.000000e+00 : f32
      %73 = vector.broadcast %cst_34 : f32 to vector<1x1xf32>
      %74 = arith.divf %72, %73 : vector<1x1xf32>
      %cst_35 = arith.constant 1.000000e+00 : f32
      %75 = vector.broadcast %cst_35 : f32 to vector<1x1xf32>
      %76 = arith.mulf %75, %31 : vector<1x1xf32>
      %cst_36 = arith.constant 1.000000e+00 : f32
      %77 = vector.broadcast %cst_36 : f32 to vector<1x1xf32>
      %78 = arith.mulf %77, %67 : vector<1x1xf32>
      %79 = arith.addf %76, %78 : vector<1x1xf32>
      %cst_37 = arith.constant 1.000000e-03 : f32
      %80 = vector.broadcast %cst_37 : f32 to vector<1x1xf32>
      %81 = arith.mulf %80, %74 : vector<1x1xf32>
      %82 = arith.addf %79, %81 : vector<1x1xf32>
      %c0_38 = arith.constant 0 : index
      %c0_39 = arith.constant 0 : index
      %83 = vector.load %arg4[%c0_38, %c0_39] : memref<1x1xf32, #tpu.memory_space<vmem>>, vector<1x1xf32>
      tpu.vector_store %arg4[%c0_38, %c0_39], %82 {strides = array<i32>} : memref<1x1xf32, #tpu.memory_space<vmem>>, vector<1x1xf32>,
    } else {
    }
    return
  }
  func.func @transform_0(%arg0: i32, %arg1: i32) -> (i32, i32) {
    %c0_i32 = arith.constant 0 : i32
    %c0_i32_0 = arith.constant 0 : i32
    return %c0_i32, %arg1 : i32, i32
  }
  func.func @transform_1(%arg0: i32, %arg1: i32) -> (i32, i32) {
    %c0_i32 = arith.constant 0 : i32
    %c0_i32_0 = arith.constant 0 : i32
    return %c0_i32, %arg1 : i32, i32
  }
  func.func @transform_2(%arg0: i32, %arg1: i32) -> (i32, i32) {
    %c0_i32 = arith.constant 0 : i32
    %c0_i32_0 = arith.constant 0 : i32
    %c0_i32_1 = arith.constant 0 : i32
    return %c0_i32, %c0_i32_0 : i32, i32
  }
}

</mosaic_0001>

<llo_original>
// kernel: fn.1
$region0: #{fn.1}
  #allocation0 [shape = 'u32[]', space=smem, size = 0x4, offset = 0x4, fixed_abs, tag = 'smem constant byte address 0x4 - core index']
  #allocation1 [shape = 'u32[72,128]{1,0:T(1,128)}', space=vmem, size = 0x9000, scoped, tag = 'internal scratch']
  #allocation2 [shape = 'f32[3,8]{1,0:T(4,128)}', space=vmem, size = 0x800, scoped, tag = 'scratch operand']
  #allocation3 [shape = 'f32[3,1]{1,0:T(4,128)}', space=vmem, size = 0x800, scoped, tag = 'scratch operand']
  #allocation4 [shape = 'f32[3,8]{1,0:T(4,128)}', space=vmem, size = 0x800, scoped, tag = 'scratch operand']
  #allocation5 [shape = 'f32[1,1]{1,0:T(1,128)}', space=vmem, size = 0x200, scoped, tag = 'scratch operand']
  %s0 = inlined_call_operand.vmem [shape: f32[8,256], index: 0, kind: input, shape index: {}]
  %s1 = inlined_call_operand.vmem [shape: s8[3,256], index: 1, kind: input, shape index: {}]
  %s2 = inlined_call_operand.hbm [shape: f32[1,1], index: 2, kind: output, shape index: {}]
  %s3 = sld [smem:[#allocation0]]
  $region61: #{fn.1} parent=0
    _
  %s5 = ssub.s32 1, %s3
  %s6 = scalar_select 0, %s5, %s3
  $region1: #{fn.1} parent=0
    #allocation6 [shape = 'u8[512]{0}', space=vmem, size = 0x400, scoped, tag = 'output window, operand 0, single buffered']
    #allocation7 [shape = 's32[2]{0}', space=sflag, size = 0x8, scoped, tag = 'scoped memory for fn.1']
    %7 = vsyncpa [#allocation7], 0
    loop: start=0, step=1, limit=4
    $region2: #{fn.1} parent=1 // loop_pre_header
      _
    $region3: #{fn.1} parent=1 // loop_header
      %s9 = sphi 0, %s13
      %p10 = scmp.ge.s32.totalorder %s9, 4
      %s16 = sphi 0, %s28
      %s17 = sphi 0, %s24
      %s18 = sphi 0, %s16
      %s19 = sphi 0, %s17
      %s20 = sphi 0, %s18
      %s21 = sphi 0, %s19
      %s31 = sphi 0, %s33
      %s34 = sphi 0, %s31
      %s35 = sphi 0, %s34
      %s51 = sphi 0, %s35
      %s57 = sphi 0, %s59
      %s60 = sphi 0, %s57
      %s61 = sphi 0, %s60
      %s77 = sphi 0, %s61
      %s81 = sphi 0, %s81
      %s83 = sphi 0, %s81
      %s84 = sphi 0, %s83
      %s98 = sphi 0, %s84
    $region4: #{fn.1} parent=1 // loop_header_branch
      %12 = sbr.rel (%p10) target = $region8
    $region5: #{fn.1} parent=1 // loop_body
      %s14 = ssub.s32 %s9, 1
      %s15 = ssub.s32 %s9, 2
      %s22 = sadd.s32 1, %s17
      %p23 = scmp.ge.s32.totalorder %s22, 1
      %s24 = scalar_select %p23, 0, %s22
      %s25 = sadd.s32 1, %s16
      %s26 = scalar_select %p23, %s25, %s16
      %p27 = scmp.ge.s32.totalorder %s26, 2
      %s28 = scalar_select %p27, 0, %s26
      %s29 = ssub.s32 %s17, %s24
      %p30 = scmp.eq.s32.totalorder %s29, 0
      %s32 = sadd.s32 %s31, 1
      %s33 = scalar_select %p30, %s31, %s32
      %p36 = pneg %p30
      %p37 = scmp.eq.s32.totalorder %s9, 1
      %p38 = por %p36, %p37
      %p39 = scmp.ne.s32.totalorder %s31, %s34
      %p40 = scmp.eq.s32.totalorder %s9, 0
      %p41 = por %p39, %p40
      %p42 = scmp.ne.s32.totalorder %s31, %s34
      %p43 = scmp.eq.s32.totalorder %s14, 1
      %p44 = por %p42, %p43
      %p45 = scmp.ne.s32.totalorder %s34, %s35
      %p46 = scmp.eq.s32.totalorder %s14, 0
      %p47 = por %p45, %p46
      %p48 = scmp.ne.s32.totalorder %s34, %s35
      %p49 = scmp.eq.s32.totalorder %s15, 1
      %p50 = por %p48, %p49
      %p52 = scmp.ne.s32.totalorder %s35, %s51
      %p53 = scmp.eq.s32.totalorder %s15, 0
      %p54 = por %p52, %p53
      %s55 = ssub.s32 %s17, %s24
      %p56 = scmp.eq.s32.totalorder %s55, 0
      %s58 = sadd.s32 %s57, 1
      %s59 = scalar_select %p56, %s57, %s58
      %p62 = pneg %p56
      %p63 = scmp.eq.s32.totalorder %s9, 1
      %p64 = por %p62, %p63
      %p65 = scmp.ne.s32.totalorder %s57, %s60
      %p66 = scmp.eq.s32.totalorder %s9, 0
      %p67 = por %p65, %p66
      %p68 = scmp.ne.s32.totalorder %s57, %s60
      %p69 = scmp.eq.s32.totalorder %s14, 1
      %p70 = por %p68, %p69
      %p71 = scmp.ne.s32.totalorder %s60, %s61
      %p72 = scmp.eq.s32.totalorder %s14, 0
      %p73 = por %p71, %p72
      %p74 = scmp.ne.s32.totalorder %s60, %s61
      %p75 = scmp.eq.s32.totalorder %s15, 1
      %p76 = por %p74, %p75
      %p78 = scmp.ne.s32.totalorder %s61, %s77
      %p79 = scmp.eq.s32.totalorder %s15, 0
      %p80 = por %p78, %p79
      %s82 = sadd.s32 %s81, 1
      %p85 = scmp.eq.s32.totalorder %s9, 1
      %p86 = scmp.ne.s32.totalorder %s81, %s83
      %p87 = scmp.eq.s32.totalorder %s9, 0
      %p88 = por %p86, %p87
      %p89 = scmp.ne.s32.totalorder %s81, %s83
      %p90 = scmp.eq.s32.totalorder %s14, 1
      %p91 = por %p89, %p90
      %p92 = scmp.ne.s32.totalorder %s83, %s84
      %p93 = scmp.eq.s32.totalorder %s14, 0
      %p94 = por %p92, %p93
      %p95 = scmp.ne.s32.totalorder %s83, %s84
      %p96 = scmp.eq.s32.totalorder %s15, 1
      %p97 = por %p95, %p96
      %p99 = scmp.ne.s32.totalorder %s84, %s98
      %p100 = scmp.eq.s32.totalorder %s15, 0
      %p101 = por %p99, %p100
      %p102 = scmp.le.s32.totalorder 1, %s9
      %p103 = scmp.lt.s32.totalorder %s9, 3
      %p104 = pnand %p102, %p103
      %p105 = pneg %p104
      // Predicated region
      $region9: #{fn.1} parent=5 // pred_check
        _
      $region10: #{fn.1} parent=5 // pred_check_branch
        %107 = sbr.rel (%p104) target = $region12
      $region11: #{fn.1} parent=5 // pred_region
        %s108 = ssub.s32 %s9, 1
        // Predicated region
        $region13: #{fn.1} parent=11 // pred_check
          %p109 = pneg %p47
        $region14: #{fn.1} parent=11 // pred_check_branch
          %111 = sbr.rel (%p109) target = $region16
        $region15: #{fn.1} parent=11 // pred_region
          %s112 = smul.u32 2, %s19
          %p113 = scmp.lt.s32.totalorder %s112, 1
          %s114 = scalar_select %p113, %s112, 1
          %s115 = smul.addr %s114, 8
          %s116 = scalar_lea.vmem %s0, %s115
          %s117 = smul.u32 2, %s19
        $region16: #{fn.1} parent=11 // pred_fallthru
          _
        // Predicated region
        $region17: #{fn.1} parent=11 // pred_check
          %p118 = pneg %p73
        $region18: #{fn.1} parent=11 // pred_check_branch
          %120 = sbr.rel (%p118) target = $region20
        $region19: #{fn.1} parent=11 // pred_region
          %s121 = smul.u32 2, %s19
          %p122 = scmp.lt.s32.totalorder %s121, 1
          %s123 = scalar_select %p122, %s121, 1
          %s124 = scalar_lea.vmem %s1, %s123
          %s125 = smul.u32 2, %s19
        $region20: #{fn.1} parent=11 // pred_fallthru
          _
      $region12: #{fn.1} parent=5 // pred_fallthru
        _
      %p126 = scmp.lt.s32.totalorder %s9, 2
      // Predicated region
      $region21: #{fn.1} parent=5 // pred_check
        %p127 = pneg %p126
      $region22: #{fn.1} parent=5 // pred_check_branch
        %129 = sbr.rel (%p127) target = $region24
      $region23: #{fn.1} parent=5 // pred_region
        _
      $region24: #{fn.1} parent=5 // pred_fallthru
        _
      %p130 = scmp.le.s32.totalorder 1, %s9
      %p131 = scmp.lt.s32.totalorder %s9, 3
      %p132 = pnand %p130, %p131
      %p133 = pneg %p132
      // Predicated region
      $region25: #{fn.1} parent=5 // pred_check
        _
      $region26: #{fn.1} parent=5 // pred_check_branch
        %135 = sbr.rel (%p132) target = $region28
      $region27: #{fn.1} parent=5 // pred_region
        %s136 = ssub.s32 %s9, 1
        %s137 = smul.u32 2, %s19
        %p138 = scmp.lt.s32.totalorder %s137, 1
        %s139 = scalar_select %p138, %s137, 1
        %s140 = smul.addr %s139, 8
        %s141 = scalar_lea.vmem %s0, %s140
        %p142 = pneg %p47
        %p143 = pneg %p44
        %s144 = smul.u32 2, %s19
        %p145 = scmp.lt.s32.totalorder %s144, 1
        %s146 = scalar_select %p145, %s144, 1
        %s147 = scalar_lea.vmem %s1, %s146
        %p148 = pneg %p73
        %p149 = pneg %p70
        %p150 = pneg %p94
        %p151 = pneg %p91
        %s152 = smul.u32 2, %s19
        %p153 = scmp.lt.s32.totalorder %s152, 1
        %s154 = scalar_select %p153, %s152, 1
        %s155 = smul.addr %s154, 8
        %s156 = scalar_lea.vmem %s0, %s155
        %s157 = smul.u32 2, %s19
        %s158 = smul.u32 2, %s19
        %p159 = scmp.lt.s32.totalorder %s158, 1
        %s160 = scalar_select %p159, %s158, 1
        %s161 = scalar_lea.vmem %s1, %s160
        %s162 = smul.u32 2, %s19
        %v163 = vld [vmem:[%s156] sm:$0xff]
        %v164 = vld [vmem:[%s156 + $0x8] sm:$0xff]
        %v165 = vld [vmem:[%s161] sm:$0x3]
        %v166 = vunpack.c.0.s8 %v165
        %v167 = vcvt.s32.f32 %v166
        %p168 = scmp.eq.s32.totalorder %s18, 0
        %p169 = scmp.eq.s32.totalorder %s19, 0
        %p170 = pnand %p168, %p169
        %p171 = pneg %p170
        // Predicated region
        $region29: #{fn.1} parent=27 // pred_check
          _
        $region30: #{fn.1} parent=27 // pred_check_branch
          %173 = sbr.rel (%p170) target = $region32
        $region31: #{fn.1} parent=27 // pred_region
          %vm174 = vcmask 59392
          %175 = vst.msk [vmem:[#allocation2] sm:$0x7] %vm174, 0.0
          %vm176 = vcmask 2048
          %177 = vst.msk [vmem:[#allocation3] sm:$0x7] %vm176, 0.0
        $region32: #{fn.1} parent=27 // pred_fallthru
          _
        // Predicated region
        $region33: #{fn.1} parent=27 // pred_check
          %p178 = pneg %p168
        $region34: #{fn.1} parent=27 // pred_check_branch
          %180 = sbr.rel (%p178) target = $region36
        $region35: #{fn.1} parent=27 // pred_region
          %v181 = vld [vmem:[#allocation2] sm:$0x7]
          %183 = vst [vmem:[#allocation1] ss:$2 sm:$0xff] %v167
          %v184 = vld.sshfl [vmem:[#allocation1] sm:$0xff pattern:$0x75316420]
          %v185 = vld.sshfl [vmem:[#allocation1 + $0x8] sm:$0xff pattern:$0x75316420]
          %188 = vmatpush.xpose.msra.mxu0 0.0
          %189 = vmatpush.xpose.msra.mxu0 0.0
          %190 = vmatpush.xpose.msra.mxu0 0.0
          %191 = vmatpush.xpose.msra.mxu0 0.0
          %192 = vmatpush.xpose.msra.mxu0 0.0
          %193 = vmatpush.xpose.msra.mxu0 0.0
          %194 = vmatpush.xpose.msra.mxu0 0.0
          %195 = vmatpush.xpose.msra.mxu0 0.0
          %196 = vmatpush.xpose.msra.mxu0 0.0
          %197 = vmatpush.xpose.msra.mxu0 0.0
          %198 = vmatpush.xpose.msra.mxu0 0.0
          %199 = vmatpush.xpose.msra.mxu0 0.0
          %200 = vmatpush.xpose.msra.mxu0 0.0
          %201 = vmatpush.xpose.msra.mxu0 0.0
          %202 = vmatpush.xpose.msra.mxu0 0.0
          %203 = vmatpush.xpose.msra.mxu0 %v163
          %204 = vmatmul.f32.gmra.mxu0 %v184
          %v205 = vpop.f32.mrf.mxu0
          %v206 = vadd.f32 0.0, %v205
          %207 = vdwg.mxu0
          %208 = vmatpush.xpose.msra.mxu0 0.0
          %209 = vmatpush.xpose.msra.mxu0 0.0
          %210 = vmatpush.xpose.msra.mxu0 0.0
          %211 = vmatpush.xpose.msra.mxu0 0.0
          %212 = vmatpush.xpose.msra.mxu0 0.0
          %213 = vmatpush.xpose.msra.mxu0 0.0
          %214 = vmatpush.xpose.msra.mxu0 0.0
          %215 = vmatpush.xpose.msra.mxu0 0.0
          %216 = vmatpush.xpose.msra.mxu0 0.0
          %217 = vmatpush.xpose.msra.mxu0 0.0
          %218 = vmatpush.xpose.msra.mxu0 0.0
          %219 = vmatpush.xpose.msra.mxu0 0.0
          %220 = vmatpush.xpose.msra.mxu0 0.0
          %221 = vmatpush.xpose.msra.mxu0 0.0
          %222 = vmatpush.xpose.msra.mxu0 0.0
          %223 = vmatpush.xpose.msra.mxu0 %v164
          %224 = vmatmul.f32.gmra.mxu0 %v185
          %v225 = vpop.f32.mrf.mxu0
          %v226 = vadd.f32 %v206, %v225
          %227 = vdwg.mxu0
          %v228 = vadd.f32 %v181, %v226
          %vm229 = vcmask 59392
          %230 = vst.msk [vmem:[#allocation2] sm:$0x7] %vm229, %v228
          %v231 = vld [vmem:[#allocation3] sm:$0x7]
          %232 = vst [vmem:[#allocation1] ss:$2 sm:$0xff] %v167
          %v233 = vld.sshfl [vmem:[#allocation1] sm:$0xff pattern:$0x75316420]
          %v234 = vld.sshfl [vmem:[#allocation1 + $0x8] sm:$0xff pattern:$0x75316420]
          %vm237 = vcmask 1042432
          %v238 = vsel %vm237, %v233, 0.0
          %v239 = vsel %vm237, %v234, 0.0
          %v240 = vadd.f32 %v238, %v239
          %241 = vadd.xlane.f32.xlu0 %v240
          %v242 = vpop.xlane.xlu0 %241
          %v243 = vadd.f32 %v231, %v242
          %vm244 = vcmask 2048
          %245 = vst.msk [vmem:[#allocation3] sm:$0x7] %vm244, %v243
        $region36: #{fn.1} parent=27 // pred_fallthru
          _
        // Predicated region
        $region37: #{fn.1} parent=27 // pred_check
          _
        $region38: #{fn.1} parent=27 // pred_check_branch
          %247 = sbr.rel (%p170) target = $region40
        $region39: #{fn.1} parent=27 // pred_region
          %v248 = vld [vmem:[#allocation2] sm:$0x7]
          %v249 = vld [vmem:[#allocation3] sm:$0x7]
          %251 = vset.pattern.permute.xlu0 0
          %252 = vperm.xlu0 %251, %v249
          %v253 = vpop.permute.xlu0 %252
          %v255 = vrcp.pop %v253
          %v256 = vmul.f32 %v253, %v255
          %v257 = vsub.f32 1.0, %v256
          %v258 = vmul.f32 %v255, %v257
          %v259 = vadd.f32 %v255, %v258
          %vm260 = vweird.f32 %v253
          %vm261 = vweird.f32 %v255
          %vm262 = vmor %vm260, %vm261
          %v263 = vsel %vm262, %v255, %v259
          %v264 = vand.u32 2147483647, %v253
          %vm265 = vcmp.eq.f32.partialorder %v264, 8.507059e+37
          %v266 = vand.u32 %v253, 2147483648
          %v267 = vor.u32 1.1754944e-38, %v266
          %v268 = vsel %vm265, %v267, %v263
          %v269 = vmul.f32 %v248, %v268
          %vm270 = vcmask 59392
          %271 = vst.msk [vmem:[#allocation4] sm:$0x7] %vm270, %v269
          %vm272 = vcmask 0
          %273 = vst.msk [vmem:[#allocation5] sm:$0x1] %vm272, 0.0
        $region40: #{fn.1} parent=27 // pred_fallthru
          _
        %p274 = scmp.eq.s32.totalorder %s18, 1
        // Predicated region
        $region41: #{fn.1} parent=27 // pred_check
          %p275 = pneg %p274
        $region42: #{fn.1} parent=27 // pred_check_branch
          %277 = sbr.rel (%p275) target = $region44
        $region43: #{fn.1} parent=27 // pred_region
          %v278 = vld [vmem:[#allocation4] sm:$0x7]
          %vm279 = vcmask 64512
          %v281 = vsel %vm279, %v278, 0
          %283 = vmatpush.msra.mxu0 0.0
          %284 = vmatpush.msra.mxu0 0.0
          %285 = vmatpush.msra.mxu0 0.0
          %286 = vmatpush.msra.mxu0 0.0
          %287 = vmatpush.msra.mxu0 0.0
          %288 = vmatpush.msra.mxu0 0.0
          %289 = vmatpush.msra.mxu0 0.0
          %290 = vmatpush.msra.mxu0 0.0
          %291 = vmatpush.msra.mxu0 0.0
          %292 = vmatpush.msra.mxu0 0.0
          %293 = vmatpush.msra.mxu0 0.0
          %294 = vmatpush.msra.mxu0 0.0
          %295 = vmatpush.msra.mxu0 0.0
          %296 = vmatpush.msra.mxu0 0.0
          %297 = vmatpush.msra.mxu0 0.0
          %298 = vmatpush.msra.mxu0 %v163
          %299 = vmatmul.f32.gmra.mxu0 %v281
          %v300 = vpop.f32.mrf.mxu0
          %v301 = vadd.f32 0.0, %v300
          %302 = vdwg.mxu0
          %303 = vmatpush.msra.mxu0 0.0
          %304 = vmatpush.msra.mxu0 0.0
          %305 = vmatpush.msra.mxu0 0.0
          %306 = vmatpush.msra.mxu0 0.0
          %307 = vmatpush.msra.mxu0 0.0
          %308 = vmatpush.msra.mxu0 0.0
          %309 = vmatpush.msra.mxu0 0.0
          %310 = vmatpush.msra.mxu0 0.0
          %311 = vmatpush.msra.mxu0 0.0
          %312 = vmatpush.msra.mxu0 0.0
          %313 = vmatpush.msra.mxu0 0.0
          %314 = vmatpush.msra.mxu0 0.0
          %315 = vmatpush.msra.mxu0 0.0
          %316 = vmatpush.msra.mxu0 0.0
          %317 = vmatpush.msra.mxu0 0.0
          %318 = vmatpush.msra.mxu0 %v164
          %319 = vmatmul.f32.gmra.mxu0 %v281
          %v320 = vpop.f32.mrf.mxu0
          %v321 = vadd.f32 0.0, %v320
          %322 = vdwg.mxu0
          %v323 = vmul.f32 %v163, %v163
          %v324 = vmul.f32 %v164, %v164
          %v325 = vrot.slane %v323, 4
          %v326 = vadd.f32 %v323, %v325
          %v327 = vrot.slane %v326, 2
          %v328 = vadd.f32 %v326, %v327
          %v329 = vrot.slane %v328, 1
          %v330 = vadd.f32 %v328, %v329
          %v331 = vrot.slane %v324, 4
          %v332 = vadd.f32 %v324, %v331
          %v333 = vrot.slane %v332, 2
          %v334 = vadd.f32 %v332, %v333
          %v335 = vrot.slane %v334, 1
          %v336 = vadd.f32 %v334, %v335
          %v337 = vmul.f32 %v278, %v278
          %vm338 = vcmask 59392
          %v339 = vsel %vm338, %v337, 0.0
          %340 = vadd.xlane.f32.xlu0 %v339
          %v341 = vpop.xlane.xlu0 %340
          %v342 = vmul.f32 %v301, 2.0
          %v343 = vmul.f32 %v321, 2.0
          %v344 = vsub.f32 %v330, %v342
          %v345 = vsub.f32 %v336, %v343
          %v346 = vadd.f32 %v344, %v341
          %v347 = vadd.f32 %v345, %v341
          %v348 = vmax.f32 %v346, 0.0
          %v349 = vmax.f32 %v347, 0.0
          %v350 = vrsqrt.pop %v348
          %v351 = vmul.f32 %v350, %v348
          %v352 = vmul.f32 %v351, %v350
          %v353 = vmul.f32 0.5, %v352
          %v354 = vsub.f32 1.5, %v353
          %v355 = vmul.f32 %v350, %v354
          %v356 = vmul.f32 %v348, %v355
          %vm357 = vcmp.eq.f32.partialorder %v348, inf
          %v358 = vsel %vm357, %v348, %v356
          %vm359 = vcmp.eq.f32.partialorder %v348, 0.0
          %v360 = vand.u32 %v348, 2147483648
          %v361 = vsel %vm359, %v360, %v358
          %v362 = vrsqrt.pop %v349
          %v363 = vmul.f32 %v362, %v349
          %v364 = vmul.f32 %v363, %v362
          %v365 = vmul.f32 0.5, %v364
          %v366 = vsub.f32 1.5, %v365
          %v367 = vmul.f32 %v362, %v366
          %v368 = vmul.f32 %v349, %v367
          %vm369 = vcmp.eq.f32.partialorder %v349, inf
          %v370 = vsel %vm369, %v349, %v368
          %vm371 = vcmp.eq.f32.partialorder %v349, 0.0
          %v372 = vand.u32 %v349, 2147483648
          %v373 = vsel %vm371, %v372, %v370
          %v374 = vsub.f32 %v361, 0.5
          %v375 = vsub.f32 %v373, 0.5
          %v376 = vmax.f32 %v374, 0.0
          %v377 = vmax.f32 %v375, 0.0
          %v378 = vld [vmem:[#allocation5] sm:$0x1]
          %v379 = vmul.f32 %v376, %v376
          %v380 = vmul.f32 %v377, %v377
          %382 = vst [vmem:[#allocation1] ss:$2 sm:$0xff] %v167
          %v383 = vld.sshfl [vmem:[#allocation1] sm:$0xff pattern:$0x75316420]
          %v384 = vld.sshfl [vmem:[#allocation1 + $0x8] sm:$0xff pattern:$0x75316420]
          %v387 = vmul.f32 %v379, %v383
          %v388 = vmul.f32 %v380, %v384
          %vm389 = vcmask 1042432
          %v390 = vsel %vm389, %v387, 0.0
          %v391 = vsel %vm389, %v388, 0.0
          %v392 = vadd.f32 %v390, %v391
          %393 = vadd.xlane.f32.xlu0 %v392
          %v394 = vpop.xlane.xlu0 %393
          %v395 = vsel %vm389, %v394, 0.0
          %v396 = vrot.slane %v395, 4
          %v397 = vadd.f32 %v395, %v396
          %v398 = vrot.slane %v397, 2
          %v399 = vadd.f32 %v397, %v398
          %v400 = vrot.slane %v399, 1
          %v401 = vadd.f32 %v399, %v400
          %v402 = vadd.f32 %v378, %v401
          %vm403 = vcmask 0
          %404 = vst.msk [vmem:[#allocation5] sm:$0x1] %vm403, %v402
        $region44: #{fn.1} parent=27 // pred_fallthru
          _
        %p405 = pnand %p274, %p169
        %p406 = pneg %p405
        // Predicated region
        $region45: #{fn.1} parent=27 // pred_check
          _
        $region46: #{fn.1} parent=27 // pred_check_branch
          %408 = sbr.rel (%p405) target = $region48
        $region47: #{fn.1} parent=27 // pred_region
          %v409 = vld [vmem:[#allocation4] sm:$0x7]
          %v410 = vld [vmem:[#allocation3] sm:$0x7]
          %v411 = vadd.f32 %v410, 0.0
          %vm412 = vcmask 2048
          %v413 = vsel %vm412, %v411, 0.0
          %v414 = vrot.slane %v413, 4
          %v415 = vadd.f32 %v413, %v414
          %v416 = vrot.slane %v415, 2
          %v417 = vadd.f32 %v415, %v416
          %v418 = vrot.slane %v417, 1
          %v419 = vadd.f32 %v417, %v418
          %v420 = vld [vmem:[#allocation5] sm:$0x1]
          %v421 = vrcp.pop %v419
          %v422 = vmul.f32 %v419, %v421
          %v423 = vsub.f32 1.0, %v422
          %v424 = vmul.f32 %v421, %v423
          %v425 = vadd.f32 %v421, %v424
          %vm426 = vweird.f32 %v419
          %vm427 = vweird.f32 %v421
          %vm428 = vmor %vm426, %vm427
          %v429 = vsel %vm428, %v421, %v425
          %v430 = vand.u32 2147483647, %v419
          %vm431 = vcmp.eq.f32.partialorder %v430, 8.507059e+37
          %v432 = vand.u32 %v419, 2147483648
          %v433 = vor.u32 1.1754944e-38, %v432
          %v434 = vsel %vm431, %v433, %v429
          %v435 = vmul.f32 %v420, %v434
          %vm436 = vcmask 64512
          %v438 = vsel %vm436, %v409, 0
          %440 = vmatpush.xpose.msra.mxu0 0.0
          %441 = vmatpush.xpose.msra.mxu0 0.0
          %442 = vmatpush.xpose.msra.mxu0 0.0
          %443 = vmatpush.xpose.msra.mxu0 0.0
          %444 = vmatpush.xpose.msra.mxu0 0.0
          %445 = vmatpush.xpose.msra.mxu0 0.0
          %446 = vmatpush.xpose.msra.mxu0 0.0
          %447 = vmatpush.xpose.msra.mxu0 0.0
          %448 = vmatpush.xpose.msra.mxu0 0.0
          %449 = vmatpush.xpose.msra.mxu0 0.0
          %450 = vmatpush.xpose.msra.mxu0 0.0
          %451 = vmatpush.xpose.msra.mxu0 0.0
          %452 = vmatpush.xpose.msra.mxu0 0.0
          %453 = vmatpush.xpose.msra.mxu0 0.0
          %454 = vmatpush.xpose.msra.mxu0 0.0
          %455 = vmatpush.xpose.msra.mxu0 %v438
          %456 = vmatmul.f32.gmra.mxu0 %v438
          %v457 = vpop.f32.mrf.mxu0
          %v458 = vadd.f32 0.0, %v457
          %459 = vdwg.mxu0
          %v460 = vmul.f32 %v409, %v409
          %vm461 = vcmask 59392
          %v462 = vsel %vm461, %v460, 0.0
          %463 = vadd.xlane.f32.xlu0 %v462
          %v464 = vpop.xlane.xlu0 %463
          %v465 = vlaneseq
          %v466 = vshrl.u32 %v465, 7
          %v467 = vlaneseq
          %v468 = vand.u32 %v467, 127
          %vm469 = vcmp.eq.s32.totalorder %v466, %v468
          %v470 = vsel %vm469, 1, 0
          %v471 = vcvt.s32.f32 %v470
          %v472 = vsub.f32 1.0, %v471
          %v473 = vmul.f32 %v458, %v471
          %vm474 = vcmask 18432
          %v475 = vsel %vm474, %v473, 0.0
          %v476 = vrot.slane %v475, 4
          %v477 = vadd.f32 %v475, %v476
          %v478 = vrot.slane %v477, 2
          %v479 = vadd.f32 %v477, %v478
          %v480 = vrot.slane %v479, 1
          %v481 = vadd.f32 %v479, %v480
          %v482 = vadd.f32 %v464, %v481
          %v483 = vmul.f32 %v458, 2.0
          %v484 = vsub.f32 %v482, %v483
          %v485 = vmax.f32 %v484, 0.0
          %v486 = vrsqrt.pop %v485
          %v487 = vmul.f32 %v486, %v485
          %v488 = vmul.f32 %v487, %v486
          %v489 = vmul.f32 0.5, %v488
          %v490 = vsub.f32 1.5, %v489
          %v491 = vmul.f32 %v486, %v490
          %v492 = vmul.f32 %v485, %v491
          %vm493 = vcmp.eq.f32.partialorder %v485, inf
          %v494 = vsel %vm493, %v485, %v492
          %vm495 = vcmp.eq.f32.partialorder %v485, 0.0
          %v496 = vand.u32 %v485, 2147483648
          %v497 = vsel %vm495, %v496, %v494
          %v498 = vmul.f32 %v472, 3.0
          %v499 = vsub.f32 %v498, %v497
          %v500 = vmax.f32 %v499, 0.0
          %v501 = vmul.f32 %v500, %v472
          %v502 = vmul.f32 %v501, %v501
          %v503 = vsel %vm474, %v502, 0.0
          %504 = vadd.xlane.f32.xlu0 %v503
          %v505 = vpop.xlane.xlu0 %504
          %vm506 = vcmask 1042432
          %v507 = vsel %vm506, %v505, 0.0
          %v508 = vrot.slane %v507, 4
          %v509 = vadd.f32 %v507, %v508
          %v510 = vrot.slane %v509, 2
          %v511 = vadd.f32 %v509, %v510
          %v512 = vrot.slane %v511, 1
          %v513 = vadd.f32 %v511, %v512
          %v514 = vrcp.pop 6.0
          %v515 = vmul.f32 6.0, %v514
          %v516 = vsub.f32 1.0, %v515
          %v517 = vmul.f32 %v514, %v516
          %v518 = vadd.f32 %v514, %v517
          %vm519 = vweird.f32 %v514
          %v520 = vsel %vm519, %v514, %v518
          %v521 = vmul.f32 %v513, %v520
          %v522 = vrsqrt.pop %v464
          %v523 = vmul.f32 %v522, %v464
          %v524 = vmul.f32 %v523, %v522
          %v525 = vmul.f32 0.5, %v524
          %v526 = vsub.f32 1.5, %v525
          %v527 = vmul.f32 %v522, %v526
          %v528 = vmul.f32 %v464, %v527
          %vm529 = vcmp.eq.f32.partialorder %v464, inf
          %v530 = vsel %vm529, %v464, %v528
          %vm531 = vcmp.eq.f32.partialorder %v464, 0.0
          %v532 = vand.u32 %v464, 2147483648
          %v533 = vsel %vm531, %v532, %v530
          %v534 = vadd.f32 %v533, 0.0
          %v535 = vsel %vm506, %v534, 0.0
          %v536 = vrot.slane %v535, 4
          %v537 = vadd.f32 %v535, %v536
          %v538 = vrot.slane %v537, 2
          %v539 = vadd.f32 %v537, %v538
          %v540 = vrot.slane %v539, 1
          %v541 = vadd.f32 %v539, %v540
          %v542 = vrcp.pop 3.0
          %v543 = vmul.f32 3.0, %v542
          %v544 = vsub.f32 1.0, %v543
          %v545 = vmul.f32 %v542, %v544
          %v546 = vadd.f32 %v542, %v545
          %vm547 = vweird.f32 %v542
          %v548 = vsel %vm547, %v542, %v546
          %v549 = vmul.f32 %v541, %v548
          %v550 = vadd.f32 %v435, %v521
          %v551 = vmul.f32 %v549, 0.001
          %v552 = vadd.f32 %v550, %v551
          %vm553 = vcmask 0
          %554 = vst.msk [vmem:[#allocation6] sm:$0x1] %vm553, %v552
        $region48: #{fn.1} parent=27 // pred_fallthru
          _
        // Predicated region
        $region49: #{fn.1} parent=27 // pred_check
          %p555 = pneg %p91
        $region50: #{fn.1} parent=27 // pred_check_branch
          %557 = sbr.rel (%p555) target = $region52
        $region51: #{fn.1} parent=27 // pred_region
          %559 = vsyncadd [#allocation7], 0
          %s561 = sshll.u32 [#allocation6], 4
          %s562 = int_to_ptr.vmem [resolvable:$true] %s561
          %s563 = sshll.u32 %s2, 4
          %s564 = int_to_ptr.hbm [resolvable:$true] %s563
          %566 = dma.vmem_to_hbm [thread:$0]  %s562, 16, %s564, [#allocation7]
        $region52: #{fn.1} parent=27 // pred_fallthru
          _
        // Predicated region
        $region53: #{fn.1} parent=27 // pred_check
          %p567 = pneg %p91
        $region54: #{fn.1} parent=27 // pred_check_branch
          %569 = sbr.rel (%p567) target = $region56
        $region55: #{fn.1} parent=27 // pred_region
          %571 = dma.done [#allocation7], 16
        $region56: #{fn.1} parent=27 // pred_fallthru
          _
      $region28: #{fn.1} parent=5 // pred_fallthru
        _
      %p572 = scmp.le.s32.totalorder 2, %s9
      // Predicated region
      $region57: #{fn.1} parent=5 // pred_check
        %p573 = pneg %p572
      $region58: #{fn.1} parent=5 // pred_check_branch
        %575 = sbr.rel (%p573) target = $region60
      $region59: #{fn.1} parent=5 // pred_region
        %s576 = ssub.s32 %s9, 2
      $region60: #{fn.1} parent=5 // pred_fallthru
        _
    $region6: #{fn.1} parent=1 // loop_footer
      %s13 = sadd.s32 1, %s9
    $region7: #{fn.1} parent=1 // loop_footer_branch
      %8 = sbr.rel target = $region3
    $region8: #{fn.1} parent=1 // loop_exit
      _
    %577 = vsyncpa [#allocation7], 1
    %s578 = scalar_lea.sflag [#allocation7], 1
    %579 = vsyncpa %s578, 1

</llo_original>
